<compile_context>
chip_gen: v5e
topology: v5e:2x2
jax: 0.10.0
libtpu: 0.0.40
codegen_flags: <defaults>
</compile_context>

<pallas_src>
import functools

import numpy as np
import jax
import jax.numpy as jnp
from jax.experimental import pallas as pl
from jax.experimental.pallas import tpu as pltpu


def _round_up(n, m):
    return -(-n // m) * m


# ----------------------------------------------------------------------------
# Fused kernel: conv0 + bias + ReLU + (pool1∘conv1-im2col as one matmul)
#               + conv1 weights as one matmul + bias + ReLU
#               + mean over (quantum, channel) + classifier.
# One grid step == one batch tile of `bt` images.
# ----------------------------------------------------------------------------
def _eqeq_kernel(patches_ref, w0_ref, b0_ref, pcat_ref, wrow_ref, b1_ref,
                 wc_ref, bc_ref, o_ref, z_ref, *, bt, sp, kk, hw2, gc0, gc1):
    # conv0 for the whole batch tile, lane-dense:
    # (gc0, K0p) @ (K0p, bt*sp) -> (gc0, bt*sp)
    a0 = jnp.dot(w0_ref[...], patches_ref[0],
                 preferred_element_type=jnp.float32)
    a0 = jnp.maximum(a0 + b0_ref[...], 0.0)          # bias + ReLU
    # (pad lanes hold relu(b0) junk; P_cat's zero rows cancel it exactly)

    # uniform mean over (quantum, channel) realised as an MXU row-matmul
    mean_row = jnp.full((1, gc1), 1.0 / gc1, dtype=jnp.float32)

    rows = []
    for b in range(bt):                              # static unroll over tile
        ab = a0[:, b * sp:(b + 1) * sp]              # vreg-aligned lane slice

        # pool1 + conv1 im2col folded into ONE constant matmul:
        # (gc0, sp) @ (sp, kk*hw2) -> (gc0, kk*hw2)
        xcat = jnp.dot(ab, pcat_ref[...], preferred_element_type=jnp.float32)

        # rearrange the kk lane slices into im2col rows (static sublane stores)
        for l in range(kk):
            z_ref[l * gc0:(l + 1) * gc0, :] = xcat[:, l * hw2:(l + 1) * hw2]

        # conv1 (weights shared across the G quantum slices) as ONE matmul,
        # K = kk*gc0.  No serial accumulator chain.
        y = jnp.dot(wrow_ref[...], z_ref[...],
                    preferred_element_type=jnp.float32)
        a1 = jnp.maximum(y + b1_ref[...], 0.0)       # (gc1, hw2)

        # mean over (quantum, channel) on the MXU, then classifier
        m = jnp.dot(mean_row, a1, preferred_element_type=jnp.float32)  # (1,hw2)
        logit = jnp.dot(m, wc_ref[...], preferred_element_type=jnp.float32)
        rows.append(logit + bc_ref[...])             # (1, num_classes)

    out = rows[0] if bt == 1 else jnp.concatenate(rows, axis=0)  # (bt, nc)
    o_ref[0] = out.astype(o_ref.dtype)


# ----------------------------------------------------------------------------
# Host-side glue: transposed im2col, constant pool / shift / block-diag folds
# ----------------------------------------------------------------------------
def _im2col_T(x, kh, kw):
    """x: (N, C, H, W) -> (N, C*kh*kw, Ho*Wo) transposed patches, plus Ho, Wo."""
    N, C, H, W = x.shape
    Ho, Wo = H - kh + 1, W - kw + 1
    cols = [x[:, :, i:i + Ho, j:j + Wo] for i in range(kh) for j in range(kw)]
    p = jnp.stack(cols, axis=2)                      # (N, C, kh*kw, Ho, Wo)
    return p.reshape(N, C * kh * kw, Ho * Wo), Ho, Wo


def _pool2d_matrix(h, w, k, s):
    """(h*w, ho*wo) matrix M with (x_flat @ M) == AvgPool2d(k, s)(x) (VALID)."""
    ho, wo = (h - k) // s + 1, (w - k) // s + 1
    m = np.zeros((h * w, ho * wo), np.float32)
    inv = 1.0 / (k * k)
    for p in range(ho):
        for q in range(wo):
            for dy in range(k):
                for dx in range(k):
                    m[(p * s + dy) * w + (q * s + dx), p * wo + q] = inv
    return m


def _shift_matrices(hp, wp, kh, kw):
    """S[i*kw+j]: (hp*wp, h2*w2) 0/1 matrix selecting the (i, j)-shifted window."""
    h2, w2 = hp - kh + 1, wp - kw + 1
    S = np.zeros((kh * kw, hp * wp, h2 * w2), np.float32)
    for i in range(kh):
        for j in range(kw):
            for y in range(h2):
                for xx in range(w2):
                    S[i * kw + j, (y + i) * wp + (xx + j), y * w2 + xx] = 1.0
    return S, h2, w2


def _expand_w1_rowcat(w1, groups):
    """(C1,C0,kh,kw) -> (G*C1, kh*kw*G*C0) row-concatenated block-diag weights."""
    C1, C0, kh, kw = w1.shape
    w_flat = w1.transpose(2, 3, 0, 1).reshape(kh * kw, C1, C0)   # (kk, C1, C0)
    eye = jnp.eye(groups, dtype=w1.dtype)
    wbig = jnp.einsum('gh,kab->kgahb', eye, w_flat)
    wbig = wbig.reshape(kh * kw, groups * C1, groups * C0)       # (kk, gc1, gc0)
    # W_rowcat[:, l*gc0 + c'] = wbig[l][:, c']  (matches Z row ordering)
    return wbig.transpose(1, 0, 2).reshape(
        groups * C1, kh * kw * groups * C0).astype(jnp.float32)


def _pick_batch_tile(B):
    """Largest tile <= 8 that divides B while keeping >= 2 grid steps (v7x)."""
    best = 1
    for bt in range(1, min(8, B) + 1):
        if B % bt == 0 and B // bt >= 2:
            best = bt
    return best


# ----------------------------------------------------------------------------
# Full forward pass (mirrors ConvolutionalEQEQ.forward)
# ----------------------------------------------------------------------------
def convolutional_eqeq_forward(x, params, pooling_kernels_size, pooling_strides,
                               batch_tile=None):
    B, Cin, H, W = x.shape
    w0, b0 = params["w0"], params["b0"]
    w1, b1 = params["w1"], params["b1"]
    wc, bc = params["wc"], params["bc"]
    OC0, _, kh0, kw0 = w0.shape
    C1, C0, kh1, kw1 = w1.shape
    G = 4                                           # quantum measurement chans
    assert OC0 == G * C0
    gc0, gc1 = G * C0, G * C1

    bt = _pick_batch_tile(B) if batch_tile is None else batch_tile
    assert B % bt == 0
    nb = B // bt

    # conv0 im2col (transposed: K on sublanes, spatial on lanes).
    patches, H1, W1 = _im2col_T(x, kh0, kw0)        # (B, K0, HW1)
    K0 = Cin * kh0 * kw0
    K0p = _round_up(K0, 8)
    HW1 = H1 * W1
    SP = _round_up(HW1, 128)                        # per-image lane width
    patches = jnp.pad(patches.astype(jnp.float32),
                      ((0, 0), (0, K0p - K0), (0, SP - HW1)))
    # lane-concatenate bt images per grid step: (nb, K0p, bt*SP)
    patches = patches.reshape(nb, bt, K0p, SP).transpose(0, 2, 1, 3)
    patches = patches.reshape(nb, K0p, bt * SP)

    w0mat = jnp.pad(w0.reshape(OC0, K0).astype(jnp.float32),
                    ((0, 0), (0, K0p - K0)))
    b0col = b0.reshape(OC0, 1).astype(jnp.float32)

    # AvgPool#1 folded into the conv1 shift matrices: P_l = pool1 @ S_l.
    pk0, ps0 = pooling_kernels_size[0], pooling_strides[0]
    if pk0 != 0:
        pool1 = _pool2d_matrix(H1, W1, pk0, ps0)    # (HW1, Hp*Wp)
        Hp, Wp = (H1 - pk0) // ps0 + 1, (W1 - pk0) // ps0 + 1
    else:
        pool1 = np.eye(HW1, dtype=np.float32)
        Hp, Wp = H1, W1
    S_np, H2, W2 = _shift_matrices(Hp, Wp, kh1, kw1)
    kk = kh1 * kw1
    HW2 = H2 * W2
    pcat = np.zeros((SP, kk * HW2), np.float32)     # zero rows kill pad junk
    for l in range(kk):
        pcat[:HW1, l * HW2:(l + 1) * HW2] = pool1 @ S_np[l]
    pcat = jnp.asarray(pcat)

    # conv1 weights (shared across the G quantum slices), row-concatenated
    # block-diagonal so conv1 is ONE matmul with K = kk*gc0.
    wrow = _expand_w1_rowcat(w1, G)                 # (gc1, kk*gc0)
    b1col = jnp.tile(b1, G).reshape(gc1, 1).astype(jnp.float32)

    # AvgPool#2 (linear, pre-classifier) folded into the classifier weights.
    # Row-major (H2, W2) flatten matches the reference's flatten(1).
    pk1, ps1 = pooling_kernels_size[1], pooling_strides[1]
    if pk1 != 0:
        wc_eff = jnp.asarray(_pool2d_matrix(H2, W2, pk1, ps1)) @ wc
    else:
        wc_eff = wc
    num_classes = wc_eff.shape[1]
    wc_eff = wc_eff.astype(jnp.float32)
    bc_row = bc.reshape(1, num_classes).astype(jnp.float32)

    def _const(a):                  # whole-array block, constant across grid
        nd = a.ndim
        return pl.BlockSpec(a.shape, lambda g, _nd=nd: (0,) * _nd)

    kernel = functools.partial(_eqeq_kernel, bt=bt, sp=SP, kk=kk, hw2=HW2,
                               gc0=gc0, gc1=gc1)

    out = pl.pallas_call(
        kernel,
        out_shape=jax.ShapeDtypeStruct((nb, bt, num_classes), jnp.float32),
        grid=(nb,),
        in_specs=[pl.BlockSpec((1, K0p, bt * SP), lambda g: (g, 0, 0)),
                  _const(w0mat), _const(b0col), _const(pcat), _const(wrow),
                  _const(b1col), _const(wc_eff), _const(bc_row)],
        out_specs=pl.BlockSpec((1, bt, num_classes), lambda g: (g, 0, 0)),
        scratch_shapes=[pltpu.VMEM((kk * gc0, HW2), jnp.float32)],
        compiler_params=pltpu.CompilerParams(
            dimension_semantics=("parallel",),      # v7x: 2 TCs share the grid
            vmem_limit_bytes=32 * 1024 * 1024),
    )(patches, w0mat, b0col, pcat, wrow, b1col, wc_eff, bc_row)
    return out.reshape(B, num_classes)


# ----------------------------------------------------------------------------
# Plain-JAX reference (for correctness check)
# ----------------------------------------------------------------------------
def reference_forward(x, params, pool_k, pool_s):
    def conv(x, w, b):
        out = jax.lax.conv_general_dilated(
            x, w, (1, 1), "VALID", dimension_numbers=("NCHW", "OIHW", "NCHW"))
        return out + b[None, :, None, None]

    def avgpool(x, k, s):
        return jax.lax.reduce_window(
            x, 0.0, jax.lax.add, (1, 1, k, k), (1, 1, s, s), "VALID") / (k * k)

    B = x.shape[0]
    q0 = jax.nn.relu(conv(x, params["w0"], params["b0"]))
    C0 = q0.shape[1] // 4
    x5 = q0.reshape(B, 4, C0, q0.shape[2], q0.shape[3]).transpose(1, 0, 2, 3, 4)
    if pool_k[0] != 0:
        xf = x5.reshape(-1, *x5.shape[2:])
        xf = avgpool(xf, pool_k[0], pool_s[0])
        x5 = xf.reshape(4, -1, *xf.shape[1:])
    xq = x5.reshape(-1, *x5.shape[2:])
    q1 = jax.nn.relu(conv(xq, params["w1"], params["b1"]))
    x5 = q1.reshape(4, B, *q1.shape[1:])
    xm = x5.transpose(1, 0, 2, 3, 4).mean(1).mean(1)
    if pool_k[1] != 0:
        xm = avgpool(xm[:, None], pool_k[1], pool_s[1])[:, 0]
    xf = xm.reshape(B, -1)
    return xf @ params["wc"] + params["bc"]


# ----------------------------------------------------------------------------
# Main
# ----------------------------------------------------------------------------
if __name__ == "__main__":
    key = jax.random.PRNGKey(0)
    k_x, k_w0, k_b0, k_w1, k_b1, k_wc, k_bc = jax.random.split(key, 7)

    # Architecture config (synthetic, deterministic):
    B, Cin, H, W = 2, 4, 16, 16
    C0, C1, K = 4, 4, 3                 # quanv feature channels, kernel size
    pooling_kernels_size = (2, 0)       # pool after quanv0, skip second pool
    pooling_strides = (2, 0)
    num_classes = 3

    x = jax.random.normal(k_x, (B, Cin, H, W), jnp.float32)

    # quanv0: Conv2d(Cin, 4*C0, 3); quanv1: Conv2d(C0, C1, 3); classifier Linear
    H1, W1 = H - K + 1, W - K + 1                       # 14, 14
    Hp, Wp = (H1 - 2) // 2 + 1, (W1 - 2) // 2 + 1       # 7, 7
    H2, W2 = Hp - K + 1, Wp - K + 1                     # 5, 5
    F = H2 * W2                                         # 25

    params = {
        "w0": 0.2 * jax.random.normal(k_w0, (4 * C0, Cin, K, K), jnp.float32),
        "b0": 0.1 * jax.random.normal(k_b0, (4 * C0,), jnp.float32),
        "w1": 0.2 * jax.random.normal(k_w1, (C1, C0, K, K), jnp.float32),
        "b1": 0.1 * jax.random.normal(k_b1, (C1,), jnp.float32),
        "wc": 0.2 * jax.random.normal(k_wc, (F, num_classes), jnp.float32),
        "bc": 0.1 * jax.random.normal(k_bc, (num_classes,), jnp.float32),
    }

    out = convolutional_eqeq_forward(x, params, pooling_kernels_size,
                                     pooling_strides)
    out = jax.block_until_ready(out)

    ref = jax.block_until_ready(
        reference_forward(x, params, pooling_kernels_size, pooling_strides))

    assert out.shape == (B, num_classes), out.shape
    assert jnp.allclose(out, ref, atol=1e-4, rtol=1e-4), (
        f"mismatch: max abs err {jnp.max(jnp.abs(out - ref))}")

    print("KERNEL_OK")
</pallas_src>

<mosaic_0001>
module attributes {stable_mosaic.version = 11 : i64} {
  func.func @_eqeq_kernel(%arg0: i32, %arg1: memref<1x40x256xf32, #tpu.memory_space<vmem>>, %arg2: memref<16x40xf32, #tpu.memory_space<vmem>>, %arg3: memref<16x1xf32, #tpu.memory_space<vmem>>, %arg4: memref<256x225xf32, #tpu.memory_space<vmem>>, %arg5: memref<16x144xf32, #tpu.memory_space<vmem>>, %arg6: memref<16x1xf32, #tpu.memory_space<vmem>>, %arg7: memref<25x3xf32, #tpu.memory_space<vmem>>, %arg8: memref<1x3xf32, #tpu.memory_space<vmem>>, %arg9: memref<1x1x3xf32, #tpu.memory_space<vmem>>, %arg10: memref<144x25xf32, #tpu.memory_space<vmem>>) attributes {dimension_semantics = [#tpu.dimension_semantics<parallel>], iteration_bounds = array<i64: 2>, scalar_prefetch = 0 : i64, scratch_operands = 1 : i64, tpu.core_type = #tpu.core_type<tc>, window_params = [{transform_indices = @transform_0, window_bounds = array<i64: 1, 40, 256>}, {pipeline_mode = #tpu.pipeline_mode<synchronous>, transform_indices = @transform_1, window_bounds = array<i64: 16, 40>}, {pipeline_mode = #tpu.pipeline_mode<synchronous>, transform_indices = @transform_2, window_bounds = array<i64: 16, 1>}, {pipeline_mode = #tpu.pipeline_mode<synchronous>, transform_indices = @transform_3, window_bounds = array<i64: 256, 225>}, {pipeline_mode = #tpu.pipeline_mode<synchronous>, transform_indices = @transform_4, window_bounds = array<i64: 16, 144>}, {pipeline_mode = #tpu.pipeline_mode<synchronous>, transform_indices = @transform_5, window_bounds = array<i64: 16, 1>}, {pipeline_mode = #tpu.pipeline_mode<synchronous>, transform_indices = @transform_6, window_bounds = array<i64: 25, 3>}, {pipeline_mode = #tpu.pipeline_mode<synchronous>, transform_indices = @transform_7, window_bounds = array<i64: 1, 3>}, {transform_indices = @transform_8, window_bounds = array<i64: 1, 1, 3>}]} {
    %c0 = arith.constant 0 : index
    %c0_0 = arith.constant 0 : index
    %0 = vector.load %arg2[%c0, %c0_0] : memref<16x40xf32, #tpu.memory_space<vmem>>, vector<16x40xf32>
    %c0_1 = arith.constant 0 : index
    %c0_2 = arith.constant 0 : index
    %c0_3 = arith.constant 0 : index
    %1 = vector.load %arg1[%c0_1, %c0_2, %c0_3] : memref<1x40x256xf32, #tpu.memory_space<vmem>>, vector<1x40x256xf32>
    %2 = vector.shape_cast %1 : vector<1x40x256xf32> to vector<40x256xf32>
    %cst = arith.constant dense<0.000000e+00> : vector<16x256xf32>
    %3 = tpu.matmul %0, %2, %cst {dimension_numbers = #tpu.dot_dimension_numbers<[1], [0], [0], [1], [0, 0, 1, 1], [], []>} : vector<16x40xf32>, vector<40x256xf32>, vector<16x256xf32> -> vector<16x256xf32>
    %c0_4 = arith.constant 0 : index
    %c0_5 = arith.constant 0 : index
    %4 = vector.load %arg3[%c0_4, %c0_5] : memref<16x1xf32, #tpu.memory_space<vmem>>, vector<16x1xf32>
    %5 = vector.broadcast %4 : vector<16x1xf32> to vector<16x256xf32>
    %6 = arith.addf %3, %5 : vector<16x256xf32>
    %cst_6 = arith.constant 0.000000e+00 : f32
    %7 = vector.broadcast %cst_6 : f32 to vector<16x256xf32>
    %8 = arith.maximumf %6, %7 : vector<16x256xf32>
    %cst_7 = arith.constant 6.250000e-02 : f32
    %9 = vector.broadcast %cst_7 : f32 to vector<1x16xf32>
    %c0_8 = arith.constant 0 : index
    %c0_9 = arith.constant 0 : index
    %10 = vector.load %arg4[%c0_8, %c0_9] : memref<256x225xf32, #tpu.memory_space<vmem>>, vector<256x225xf32>
    %cst_10 = arith.constant dense<0.000000e+00> : vector<16x225xf32>
    %11 = tpu.matmul %8, %10, %cst_10 {dimension_numbers = #tpu.dot_dimension_numbers<[1], [0], [0], [1], [0, 0, 1, 1], [], []>} : vector<16x256xf32>, vector<256x225xf32>, vector<16x225xf32> -> vector<16x225xf32>
    %12 = vector.extract_strided_slice %11 {offsets = [0, 0], sizes = [16, 25], strides = [1, 1]} : vector<16x225xf32> to vector<16x25xf32>
    %c0_11 = arith.constant 0 : index
    %c0_12 = arith.constant 0 : index
    %13 = vector.load %arg10[%c0_11, %c0_12] : memref<144x25xf32, #tpu.memory_space<vmem>>, vector<16x25xf32>
    tpu.vector_store %arg10[%c0_11, %c0_12], %12 {strides = array<i32>} : memref<144x25xf32, #tpu.memory_space<vmem>>, vector<16x25xf32>,
    %14 = vector.extract_strided_slice %11 {offsets = [0, 25], sizes = [16, 25], strides = [1, 1]} : vector<16x225xf32> to vector<16x25xf32>
    %c16 = arith.constant 16 : index
    %c0_13 = arith.constant 0 : index
    %15 = vector.load %arg10[%c16, %c0_13] : memref<144x25xf32, #tpu.memory_space<vmem>>, vector<16x25xf32>
    tpu.vector_store %arg10[%c16, %c0_13], %14 {strides = array<i32>} : memref<144x25xf32, #tpu.memory_space<vmem>>, vector<16x25xf32>,
    %16 = vector.extract_strided_slice %11 {offsets = [0, 50], sizes = [16, 25], strides = [1, 1]} : vector<16x225xf32> to vector<16x25xf32>
    %c32 = arith.constant 32 : index
    %c0_14 = arith.constant 0 : index
    %17 = vector.load %arg10[%c32, %c0_14] : memref<144x25xf32, #tpu.memory_space<vmem>>, vector<16x25xf32>
    tpu.vector_store %arg10[%c32, %c0_14], %16 {strides = array<i32>} : memref<144x25xf32, #tpu.memory_space<vmem>>, vector<16x25xf32>,
    %18 = vector.extract_strided_slice %11 {offsets = [0, 75], sizes = [16, 25], strides = [1, 1]} : vector<16x225xf32> to vector<16x25xf32>
    %c48 = arith.constant 48 : index
    %c0_15 = arith.constant 0 : index
    %19 = vector.load %arg10[%c48, %c0_15] : memref<144x25xf32, #tpu.memory_space<vmem>>, vector<16x25xf32>
    tpu.vector_store %arg10[%c48, %c0_15], %18 {strides = array<i32>} : memref<144x25xf32, #tpu.memory_space<vmem>>, vector<16x25xf32>,
    %20 = vector.extract_strided_slice %11 {offsets = [0, 100], sizes = [16, 25], strides = [1, 1]} : vector<16x225xf32> to vector<16x25xf32>
    %c64 = arith.constant 64 : index
    %c0_16 = arith.constant 0 : index
    %21 = vector.load %arg10[%c64, %c0_16] : memref<144x25xf32, #tpu.memory_space<vmem>>, vector<16x25xf32>
    tpu.vector_store %arg10[%c64, %c0_16], %20 {strides = array<i32>} : memref<144x25xf32, #tpu.memory_space<vmem>>, vector<16x25xf32>,
    %22 = vector.extract_strided_slice %11 {offsets = [0, 125], sizes = [16, 25], strides = [1, 1]} : vector<16x225xf32> to vector<16x25xf32>
    %c80 = arith.constant 80 : index
    %c0_17 = arith.constant 0 : index
    %23 = vector.load %arg10[%c80, %c0_17] : memref<144x25xf32, #tpu.memory_space<vmem>>, vector<16x25xf32>
    tpu.vector_store %arg10[%c80, %c0_17], %22 {strides = array<i32>} : memref<144x25xf32, #tpu.memory_space<vmem>>, vector<16x25xf32>,
    %24 = vector.extract_strided_slice %11 {offsets = [0, 150], sizes = [16, 25], strides = [1, 1]} : vector<16x225xf32> to vector<16x25xf32>
    %c96 = arith.constant 96 : index
    %c0_18 = arith.constant 0 : index
    %25 = vector.load %arg10[%c96, %c0_18] : memref<144x25xf32, #tpu.memory_space<vmem>>, vector<16x25xf32>
    tpu.vector_store %arg10[%c96, %c0_18], %24 {strides = array<i32>} : memref<144x25xf32, #tpu.memory_space<vmem>>, vector<16x25xf32>,
    %26 = vector.extract_strided_slice %11 {offsets = [0, 175], sizes = [16, 25], strides = [1, 1]} : vector<16x225xf32> to vector<16x25xf32>
    %c112 = arith.constant 112 : index
    %c0_19 = arith.constant 0 : index
    %27 = vector.load %arg10[%c112, %c0_19] : memref<144x25xf32, #tpu.memory_space<vmem>>, vector<16x25xf32>
    tpu.vector_store %arg10[%c112, %c0_19], %26 {strides = array<i32>} : memref<144x25xf32, #tpu.memory_space<vmem>>, vector<16x25xf32>,
    %28 = vector.extract_strided_slice %11 {offsets = [0, 200], sizes = [16, 25], strides = [1, 1]} : vector<16x225xf32> to vector<16x25xf32>
    %c128 = arith.constant 128 : index
    %c0_20 = arith.constant 0 : index
    %29 = vector.load %arg10[%c128, %c0_20] : memref<144x25xf32, #tpu.memory_space<vmem>>, vector<16x25xf32>
    tpu.vector_store %arg10[%c128, %c0_20], %28 {strides = array<i32>} : memref<144x25xf32, #tpu.memory_space<vmem>>, vector<16x25xf32>,
    %c0_21 = arith.constant 0 : index
    %c0_22 = arith.constant 0 : index
    %30 = vector.load %arg5[%c0_21, %c0_22] : memref<16x144xf32, #tpu.memory_space<vmem>>, vector<16x144xf32>
    %c0_23 = arith.constant 0 : index
    %c0_24 = arith.constant 0 : index
    %31 = vector.load %arg10[%c0_23, %c0_24] : memref<144x25xf32, #tpu.memory_space<vmem>>, vector<144x25xf32>
    %cst_25 = arith.constant dense<0.000000e+00> : vector<16x25xf32>
    %32 = tpu.matmul %30, %31, %cst_25 {dimension_numbers = #tpu.dot_dimension_numbers<[1], [0], [0], [1], [0, 0, 1, 1], [], []>} : vector<16x144xf32>, vector<144x25xf32>, vector<16x25xf32> -> vector<16x25xf32>
    %c0_26 = arith.constant 0 : index
    %c0_27 = arith.constant 0 : index
    %33 = vector.load %arg6[%c0_26, %c0_27] : memref<16x1xf32, #tpu.memory_space<vmem>>, vector<16x1xf32>
    %34 = vector.broadcast %33 : vector<16x1xf32> to vector<16x25xf32>
    %35 = arith.addf %32, %34 : vector<16x25xf32>
    %cst_28 = arith.constant 0.000000e+00 : f32
    %36 = vector.broadcast %cst_28 : f32 to vector<16x25xf32>
    %37 = arith.maximumf %35, %36 : vector<16x25xf32>
    %cst_29 = arith.constant dense<0.000000e+00> : vector<1x25xf32>
    %38 = tpu.matmul %9, %37, %cst_29 {dimension_numbers = #tpu.dot_dimension_numbers<[1], [0], [0], [1], [0, 0, 1, 1], [], []>} : vector<1x16xf32>, vector<16x25xf32>, vector<1x25xf32> -> vector<1x25xf32>
    %c0_30 = arith.constant 0 : index
    %c0_31 = arith.constant 0 : index
    %39 = vector.load %arg7[%c0_30, %c0_31] : memref<25x3xf32, #tpu.memory_space<vmem>>, vector<25x3xf32>
    %cst_32 = arith.constant dense<0.000000e+00> : vector<1x3xf32>
    %40 = tpu.matmul %38, %39, %cst_32 {dimension_numbers = #tpu.dot_dimension_numbers<[1], [0], [0], [1], [0, 0, 1, 1], [], []>} : vector<1x25xf32>, vector<25x3xf32>, vector<1x3xf32> -> vector<1x3xf32>
    %c0_33 = arith.constant 0 : index
    %c0_34 = arith.constant 0 : index
    %41 = vector.load %arg8[%c0_33, %c0_34] : memref<1x3xf32, #tpu.memory_space<vmem>>, vector<1x3xf32>
    %42 = arith.addf %40, %41 : vector<1x3xf32>
    %c0_35 = arith.constant 0 : index
    %c0_36 = arith.constant 0 : index
    %c0_37 = arith.constant 0 : index
    %43 = vector.load %arg9[%c0_35, %c0_36, %c0_37] : memref<1x1x3xf32, #tpu.memory_space<vmem>>, vector<1x1x3xf32>
    %44 = vector.shape_cast %43 : vector<1x1x3xf32> to vector<1x3xf32>
    %45 = vector.shape_cast %42 : vector<1x3xf32> to vector<1x1x3xf32>
    tpu.vector_store %arg9[%c0_35, %c0_36, %c0_37], %45 {strides = array<i32>} : memref<1x1x3xf32, #tpu.memory_space<vmem>>, vector<1x1x3xf32>,
    return
  }
  func.func @transform_0(%arg0: i32) -> (i32, i32, i32) {
    %c0_i32 = arith.constant 0 : i32
    %c0_i32_0 = arith.constant 0 : i32
    %c0_i32_1 = arith.constant 0 : i32
    return %arg0, %c0_i32, %c0_i32_0 : i32, i32, i32
  }
  func.func @transform_1(%arg0: i32) -> (i32, i32) {
    %c0_i32 = arith.constant 0 : i32
    %c0_i32_0 = arith.constant 0 : i32
    %c0_i32_1 = arith.constant 0 : i32
    return %c0_i32, %c0_i32_0 : i32, i32
  }
  func.func @transform_2(%arg0: i32) -> (i32, i32) {
    %c0_i32 = arith.constant 0 : i32
    %c0_i32_0 = arith.constant 0 : i32
    %c0_i32_1 = arith.constant 0 : i32
    return %c0_i32, %c0_i32_0 : i32, i32
  }
  func.func @transform_3(%arg0: i32) -> (i32, i32) {
    %c0_i32 = arith.constant 0 : i32
    %c0_i32_0 = arith.constant 0 : i32
    %c0_i32_1 = arith.constant 0 : i32
    return %c0_i32, %c0_i32_0 : i32, i32
  }
  func.func @transform_4(%arg0: i32) -> (i32, i32) {
    %c0_i32 = arith.constant 0 : i32
    %c0_i32_0 = arith.constant 0 : i32
    %c0_i32_1 = arith.constant 0 : i32
    return %c0_i32, %c0_i32_0 : i32, i32
  }
  func.func @transform_5(%arg0: i32) -> (i32, i32) {
    %c0_i32 = arith.constant 0 : i32
    %c0_i32_0 = arith.constant 0 : i32
    %c0_i32_1 = arith.constant 0 : i32
    return %c0_i32, %c0_i32_0 : i32, i32
  }
  func.func @transform_6(%arg0: i32) -> (i32, i32) {
    %c0_i32 = arith.constant 0 : i32
    %c0_i32_0 = arith.constant 0 : i32
    %c0_i32_1 = arith.constant 0 : i32
    return %c0_i32, %c0_i32_0 : i32, i32
  }
  func.func @transform_7(%arg0: i32) -> (i32, i32) {
    %c0_i32 = arith.constant 0 : i32
    %c0_i32_0 = arith.constant 0 : i32
    %c0_i32_1 = arith.constant 0 : i32
    return %c0_i32, %c0_i32_0 : i32, i32
  }
  func.func @transform_8(%arg0: i32) -> (i32, i32, i32) {
    %c0_i32 = arith.constant 0 : i32
    %c0_i32_0 = arith.constant 0 : i32
    %c0_i32_1 = arith.constant 0 : i32
    return %arg0, %c0_i32, %c0_i32_0 : i32, i32, i32
  }
}

</mosaic_0001>

<llo_original>
// kernel: tpu_custom_call.1
$region0: #{tpu_custom_call.1}
  #allocation0 [shape = 'u32[]', space=smem, size = 0x4, offset = 0x4, fixed_abs, tag = 'smem constant byte address 0x4 - core index']
  #allocation1 [shape = 'u32[72,128]{1,0:T(1,128)}', space=vmem, size = 0x9000, scoped, tag = 'internal scratch']
  #allocation2 [shape = 'f32[144,25]{1,0:T(8,128)}', space=vmem, size = 0x12000, scoped, tag = 'scratch operand']
  %s0 = inlined_call_operand.vmem [shape: f32[2,40,256], index: 0, kind: input, shape index: {}]
  %s1 = inlined_call_operand.vmem [shape: f32[16,40], index: 1, kind: input, shape index: {}]
  %s2 = inlined_call_operand.vmem [shape: f32[16,1], index: 2, kind: input, shape index: {}]
  %s3 = inlined_call_operand.vmem [shape: f32[256,225], index: 3, kind: input, shape index: {}]
  %s4 = inlined_call_operand.vmem [shape: f32[16,144], index: 4, kind: input, shape index: {}]
  %s5 = inlined_call_operand.vmem [shape: f32[16,1], index: 5, kind: input, shape index: {}]
  %s6 = inlined_call_operand.vmem [shape: f32[25,3], index: 6, kind: input, shape index: {}]
  %s7 = inlined_call_operand.vmem [shape: f32[1,3], index: 7, kind: input, shape index: {}]
  %s8 = inlined_call_operand.hbm [shape: f32[2,1,3], index: 8, kind: output, shape index: {}]
  %s9 = sld [smem:[#allocation0]]
  $region65: #{tpu_custom_call.1} parent=0
    _
  %s11 = ssub.s32 1, %s9
  %s12 = scalar_select 0, %s11, %s9
  $region1: #{tpu_custom_call.1} parent=0
    #allocation3 [shape = 'u8[1024]{0}', space=vmem, size = 0x400, scoped, tag = 'output window, operand 0']
    #allocation4 [shape = 's32[2]{0}', space=sflag, size = 0x8, scoped, tag = 'scoped memory for tpu_custom_call.1']
    %13 = vsyncpa [#allocation4], 0
    %s14 = scalar_lea.sflag [#allocation4], 1
    %15 = vsyncpa %s14, 0
    loop: start=0, step=1, limit=4
    $region2: #{tpu_custom_call.1} parent=1 // loop_pre_header
      _
    $region3: #{tpu_custom_call.1} parent=1 // loop_header
      %s17 = sphi 0, %s21
      %p18 = scmp.ge.s32.totalorder %s17, 4
      %s27 = sphi 0, %s29
      %s30 = sphi 0, %s27
      %s31 = sphi 0, %s30
      %s47 = sphi 0, %s31
      %s51 = sphi 0, %s51
      %s53 = sphi 0, %s51
      %s54 = sphi 0, %s53
      %s68 = sphi 0, %s54
      %s72 = sphi 0, %s72
      %s74 = sphi 0, %s72
      %s75 = sphi 0, %s74
      %s89 = sphi 0, %s75
      %s93 = sphi 0, %s93
      %s95 = sphi 0, %s93
      %s96 = sphi 0, %s95
      %s110 = sphi 0, %s96
      %s114 = sphi 0, %s114
      %s116 = sphi 0, %s114
      %s117 = sphi 0, %s116
      %s131 = sphi 0, %s117
      %s135 = sphi 0, %s135
      %s137 = sphi 0, %s135
      %s138 = sphi 0, %s137
      %s152 = sphi 0, %s138
      %s156 = sphi 0, %s156
      %s158 = sphi 0, %s156
      %s159 = sphi 0, %s158
      %s173 = sphi 0, %s159
      %s177 = sphi 0, %s177
      %s179 = sphi 0, %s177
      %s180 = sphi 0, %s179
      %s194 = sphi 0, %s180
      %s200 = sphi 0, %s202
      %s203 = sphi 0, %s200
      %s204 = sphi 0, %s203
      %s220 = sphi 0, %s204
    $region4: #{tpu_custom_call.1} parent=1 // loop_header_branch
      %20 = sbr.rel (%p18) target = $region8
    $region5: #{tpu_custom_call.1} parent=1 // loop_body
      %s22 = ssub.s32 %s17, 1
      %s23 = ssub.s32 %s17, 2
      %s24 = sadd.s32 %s17, 1
      %s25 = ssub.s32 %s17, %s24
      %p26 = scmp.eq.s32.totalorder %s25, 0
      %s28 = sadd.s32 %s27, 1
      %s29 = scalar_select %p26, %s27, %s28
      %p32 = pneg %p26
      %p33 = scmp.eq.s32.totalorder %s17, 1
      %p34 = por %p32, %p33
      %p35 = scmp.ne.s32.totalorder %s27, %s30
      %p36 = scmp.eq.s32.totalorder %s17, 0
      %p37 = por %p35, %p36
      %p38 = scmp.ne.s32.totalorder %s27, %s30
      %p39 = scmp.eq.s32.totalorder %s22, 1
      %p40 = por %p38, %p39
      %p41 = scmp.ne.s32.totalorder %s30, %s31
      %p42 = scmp.eq.s32.totalorder %s22, 0
      %p43 = por %p41, %p42
      %p44 = scmp.ne.s32.totalorder %s30, %s31
      %p45 = scmp.eq.s32.totalorder %s23, 1
      %p46 = por %p44, %p45
      %p48 = scmp.ne.s32.totalorder %s31, %s47
      %p49 = scmp.eq.s32.totalorder %s23, 0
      %p50 = por %p48, %p49
      %s52 = sadd.s32 %s51, 1
      %p55 = scmp.eq.s32.totalorder %s17, 1
      %p56 = scmp.ne.s32.totalorder %s51, %s53
      %p57 = scmp.eq.s32.totalorder %s17, 0
      %p58 = por %p56, %p57
      %p59 = scmp.ne.s32.totalorder %s51, %s53
      %p60 = scmp.eq.s32.totalorder %s22, 1
      %p61 = por %p59, %p60
      %p62 = scmp.ne.s32.totalorder %s53, %s54
      %p63 = scmp.eq.s32.totalorder %s22, 0
      %p64 = por %p62, %p63
      %p65 = scmp.ne.s32.totalorder %s53, %s54
      %p66 = scmp.eq.s32.totalorder %s23, 1
      %p67 = por %p65, %p66
      %p69 = scmp.ne.s32.totalorder %s54, %s68
      %p70 = scmp.eq.s32.totalorder %s23, 0
      %p71 = por %p69, %p70
      %s73 = sadd.s32 %s72, 1
      %p76 = scmp.eq.s32.totalorder %s17, 1
      %p77 = scmp.ne.s32.totalorder %s72, %s74
      %p78 = scmp.eq.s32.totalorder %s17, 0
      %p79 = por %p77, %p78
      %p80 = scmp.ne.s32.totalorder %s72, %s74
      %p81 = scmp.eq.s32.totalorder %s22, 1
      %p82 = por %p80, %p81
      %p83 = scmp.ne.s32.totalorder %s74, %s75
      %p84 = scmp.eq.s32.totalorder %s22, 0
      %p85 = por %p83, %p84
      %p86 = scmp.ne.s32.totalorder %s74, %s75
      %p87 = scmp.eq.s32.totalorder %s23, 1
      %p88 = por %p86, %p87
      %p90 = scmp.ne.s32.totalorder %s75, %s89
      %p91 = scmp.eq.s32.totalorder %s23, 0
      %p92 = por %p90, %p91
      %s94 = sadd.s32 %s93, 1
      %p97 = scmp.eq.s32.totalorder %s17, 1
      %p98 = scmp.ne.s32.totalorder %s93, %s95
      %p99 = scmp.eq.s32.totalorder %s17, 0
      %p100 = por %p98, %p99
      %p101 = scmp.ne.s32.totalorder %s93, %s95
      %p102 = scmp.eq.s32.totalorder %s22, 1
      %p103 = por %p101, %p102
      %p104 = scmp.ne.s32.totalorder %s95, %s96
      %p105 = scmp.eq.s32.totalorder %s22, 0
      %p106 = por %p104, %p105
      %p107 = scmp.ne.s32.totalorder %s95, %s96
      %p108 = scmp.eq.s32.totalorder %s23, 1
      %p109 = por %p107, %p108
      %p111 = scmp.ne.s32.totalorder %s96, %s110
      %p112 = scmp.eq.s32.totalorder %s23, 0
      %p113 = por %p111, %p112
      %s115 = sadd.s32 %s114, 1
      %p118 = scmp.eq.s32.totalorder %s17, 1
      %p119 = scmp.ne.s32.totalorder %s114, %s116
      %p120 = scmp.eq.s32.totalorder %s17, 0
      %p121 = por %p119, %p120
      %p122 = scmp.ne.s32.totalorder %s114, %s116
      %p123 = scmp.eq.s32.totalorder %s22, 1
      %p124 = por %p122, %p123
      %p125 = scmp.ne.s32.totalorder %s116, %s117
      %p126 = scmp.eq.s32.totalorder %s22, 0
      %p127 = por %p125, %p126
      %p128 = scmp.ne.s32.totalorder %s116, %s117
      %p129 = scmp.eq.s32.totalorder %s23, 1
      %p130 = por %p128, %p129
      %p132 = scmp.ne.s32.totalorder %s117, %s131
      %p133 = scmp.eq.s32.totalorder %s23, 0
      %p134 = por %p132, %p133
      %s136 = sadd.s32 %s135, 1
      %p139 = scmp.eq.s32.totalorder %s17, 1
      %p140 = scmp.ne.s32.totalorder %s135, %s137
      %p141 = scmp.eq.s32.totalorder %s17, 0
      %p142 = por %p140, %p141
      %p143 = scmp.ne.s32.totalorder %s135, %s137
      %p144 = scmp.eq.s32.totalorder %s22, 1
      %p145 = por %p143, %p144
      %p146 = scmp.ne.s32.totalorder %s137, %s138
      %p147 = scmp.eq.s32.totalorder %s22, 0
      %p148 = por %p146, %p147
      %p149 = scmp.ne.s32.totalorder %s137, %s138
      %p150 = scmp.eq.s32.totalorder %s23, 1
      %p151 = por %p149, %p150
      %p153 = scmp.ne.s32.totalorder %s138, %s152
      %p154 = scmp.eq.s32.totalorder %s23, 0
      %p155 = por %p153, %p154
      %s157 = sadd.s32 %s156, 1
      %p160 = scmp.eq.s32.totalorder %s17, 1
      %p161 = scmp.ne.s32.totalorder %s156, %s158
      %p162 = scmp.eq.s32.totalorder %s17, 0
      %p163 = por %p161, %p162
      %p164 = scmp.ne.s32.totalorder %s156, %s158
      %p165 = scmp.eq.s32.totalorder %s22, 1
      %p166 = por %p164, %p165
      %p167 = scmp.ne.s32.totalorder %s158, %s159
      %p168 = scmp.eq.s32.totalorder %s22, 0
      %p169 = por %p167, %p168
      %p170 = scmp.ne.s32.totalorder %s158, %s159
      %p171 = scmp.eq.s32.totalorder %s23, 1
      %p172 = por %p170, %p171
      %p174 = scmp.ne.s32.totalorder %s159, %s173
      %p175 = scmp.eq.s32.totalorder %s23, 0
      %p176 = por %p174, %p175
      %s178 = sadd.s32 %s177, 1
      %p181 = scmp.eq.s32.totalorder %s17, 1
      %p182 = scmp.ne.s32.totalorder %s177, %s179
      %p183 = scmp.eq.s32.totalorder %s17, 0
      %p184 = por %p182, %p183
      %p185 = scmp.ne.s32.totalorder %s177, %s179
      %p186 = scmp.eq.s32.totalorder %s22, 1
      %p187 = por %p185, %p186
      %p188 = scmp.ne.s32.totalorder %s179, %s180
      %p189 = scmp.eq.s32.totalorder %s22, 0
      %p190 = por %p188, %p189
      %p191 = scmp.ne.s32.totalorder %s179, %s180
      %p192 = scmp.eq.s32.totalorder %s23, 1
      %p193 = por %p191, %p192
      %p195 = scmp.ne.s32.totalorder %s180, %s194
      %p196 = scmp.eq.s32.totalorder %s23, 0
      %p197 = por %p195, %p196
      %s198 = ssub.s32 %s17, %s24
      %p199 = scmp.eq.s32.totalorder %s198, 0
      %s201 = sadd.s32 %s200, 1
      %s202 = scalar_select %p199, %s200, %s201
      %p205 = pneg %p199
      %p206 = scmp.eq.s32.totalorder %s17, 1
      %p207 = por %p205, %p206
      %p208 = scmp.ne.s32.totalorder %s200, %s203
      %p209 = scmp.eq.s32.totalorder %s17, 0
      %p210 = por %p208, %p209
      %p211 = scmp.ne.s32.totalorder %s200, %s203
      %p212 = scmp.eq.s32.totalorder %s22, 1
      %p213 = por %p211, %p212
      %p214 = scmp.ne.s32.totalorder %s203, %s204
      %p215 = scmp.eq.s32.totalorder %s22, 0
      %p216 = por %p214, %p215
      %p217 = scmp.ne.s32.totalorder %s203, %s204
      %p218 = scmp.eq.s32.totalorder %s23, 1
      %p219 = por %p217, %p218
      %p221 = scmp.ne.s32.totalorder %s204, %s220
      %p222 = scmp.eq.s32.totalorder %s23, 0
      %p223 = por %p221, %p222
      %p224 = scmp.le.s32.totalorder 1, %s17
      %p225 = scmp.lt.s32.totalorder %s17, 3
      %p226 = pnand %p224, %p225
      %p227 = pneg %p226
      // Predicated region
      $region9: #{tpu_custom_call.1} parent=5 // pred_check
        _
      $region10: #{tpu_custom_call.1} parent=5 // pred_check_branch
        %229 = sbr.rel (%p226) target = $region12
      $region11: #{tpu_custom_call.1} parent=5 // pred_region
        %s230 = ssub.s32 %s17, 1
        // Predicated region
        $region13: #{tpu_custom_call.1} parent=11 // pred_check
          %p231 = pneg %p64
        $region14: #{tpu_custom_call.1} parent=11 // pred_check_branch
          %233 = sbr.rel (%p231) target = $region16
        $region15: #{tpu_custom_call.1} parent=11 // pred_region
          _
        $region16: #{tpu_custom_call.1} parent=11 // pred_fallthru
          _
        // Predicated region
        $region17: #{tpu_custom_call.1} parent=11 // pred_check
          %p234 = pneg %p85
        $region18: #{tpu_custom_call.1} parent=11 // pred_check_branch
          %236 = sbr.rel (%p234) target = $region20
        $region19: #{tpu_custom_call.1} parent=11 // pred_region
          _
        $region20: #{tpu_custom_call.1} parent=11 // pred_fallthru
          _
        // Predicated region
        $region21: #{tpu_custom_call.1} parent=11 // pred_check
          %p237 = pneg %p106
        $region22: #{tpu_custom_call.1} parent=11 // pred_check_branch
          %239 = sbr.rel (%p237) target = $region24
        $region23: #{tpu_custom_call.1} parent=11 // pred_region
          _
        $region24: #{tpu_custom_call.1} parent=11 // pred_fallthru
          _
        // Predicated region
        $region25: #{tpu_custom_call.1} parent=11 // pred_check
          %p240 = pneg %p127
        $region26: #{tpu_custom_call.1} parent=11 // pred_check_branch
          %242 = sbr.rel (%p240) target = $region28
        $region27: #{tpu_custom_call.1} parent=11 // pred_region
          _
        $region28: #{tpu_custom_call.1} parent=11 // pred_fallthru
          _
        // Predicated region
        $region29: #{tpu_custom_call.1} parent=11 // pred_check
          %p243 = pneg %p148
        $region30: #{tpu_custom_call.1} parent=11 // pred_check_branch
          %245 = sbr.rel (%p243) target = $region32
        $region31: #{tpu_custom_call.1} parent=11 // pred_region
          _
        $region32: #{tpu_custom_call.1} parent=11 // pred_fallthru
          _
        // Predicated region
        $region33: #{tpu_custom_call.1} parent=11 // pred_check
          %p246 = pneg %p169
        $region34: #{tpu_custom_call.1} parent=11 // pred_check_branch
          %248 = sbr.rel (%p246) target = $region36
        $region35: #{tpu_custom_call.1} parent=11 // pred_region
          _
        $region36: #{tpu_custom_call.1} parent=11 // pred_fallthru
          _
        // Predicated region
        $region37: #{tpu_custom_call.1} parent=11 // pred_check
          %p249 = pneg %p190
        $region38: #{tpu_custom_call.1} parent=11 // pred_check_branch
          %251 = sbr.rel (%p249) target = $region40
        $region39: #{tpu_custom_call.1} parent=11 // pred_region
          _
        $region40: #{tpu_custom_call.1} parent=11 // pred_fallthru
          _
      $region12: #{tpu_custom_call.1} parent=5 // pred_fallthru
        _
      %p252 = scmp.lt.s32.totalorder %s17, 2
      // Predicated region
      $region41: #{tpu_custom_call.1} parent=5 // pred_check
        %p253 = pneg %p252
      $region42: #{tpu_custom_call.1} parent=5 // pred_check_branch
        %255 = sbr.rel (%p253) target = $region44
      $region43: #{tpu_custom_call.1} parent=5 // pred_region
        // Predicated region
        $region45: #{tpu_custom_call.1} parent=43 // pred_check
          %p256 = pneg %p37
        $region46: #{tpu_custom_call.1} parent=43 // pred_check_branch
          %258 = sbr.rel (%p256) target = $region48
        $region47: #{tpu_custom_call.1} parent=43 // pred_region
          %p259 = scmp.lt.s32.totalorder %s17, 1
          %s260 = scalar_select %p259, %s17, 1
          %s261 = smul.addr %s260, 10
          %s262 = smul.addr %s261, 8
          %s263 = scalar_lea.vmem %s0, %s262
        $region48: #{tpu_custom_call.1} parent=43 // pred_fallthru
          _
      $region44: #{tpu_custom_call.1} parent=5 // pred_fallthru
        _
      %p264 = scmp.le.s32.totalorder 1, %s17
      %p265 = scmp.lt.s32.totalorder %s17, 3
      %p266 = pnand %p264, %p265
      %p267 = pneg %p266
      // Predicated region
      $region49: #{tpu_custom_call.1} parent=5 // pred_check
        _
      $region50: #{tpu_custom_call.1} parent=5 // pred_check_branch
        %269 = sbr.rel (%p266) target = $region52
      $region51: #{tpu_custom_call.1} parent=5 // pred_region
        %s270 = ssub.s32 %s17, 1
        %p271 = scmp.lt.s32.totalorder %s22, 1
        %s272 = scalar_select %p271, %s22, 1
        %s273 = smul.addr %s272, 10
        %s274 = smul.addr %s273, 8
        %s275 = scalar_lea.vmem %s0, %s274
        %p276 = pneg %p43
        %p277 = pneg %p40
        %p278 = pneg %p64
        %p279 = pneg %p61
        %p280 = pneg %p85
        %p281 = pneg %p82
        %p282 = pneg %p106
        %p283 = pneg %p103
        %p284 = pneg %p127
        %p285 = pneg %p124
        %p286 = pneg %p148
        %p287 = pneg %p145
        %p288 = pneg %p169
        %p289 = pneg %p166
        %p290 = pneg %p190
        %p291 = pneg %p187
        %p292 = pneg %p216
        %p293 = pneg %p213
        %s294 = sand.u32 %s203, 1
        %s295 = scalar_lea.sflag [#allocation4], %s294
        %s296 = sand.u32 %s203, 1
        %s297 = scalar_lea.vmem [#allocation3], %s296
        %p298 = scmp.lt.s32.totalorder %s22, 1
        %s299 = scalar_select %p298, %s22, 1
        %s300 = smul.addr %s299, 10
        %s301 = smul.addr %s300, 8
        %s302 = scalar_lea.vmem %s0, %s301
        %v303 = vld [vmem:[%s1] sm:$0xff]
        %v304 = vld [vmem:[%s1 + $0x8] sm:$0xff]
        %v305 = vld [vmem:[%s302] sm:$0xff]
        %v306 = vld [vmem:[%s302 + $0x8] sm:$0xff]
        %v307 = vld [vmem:[%s302 + $0x10] sm:$0xff]
        %v308 = vld [vmem:[%s302 + $0x18] sm:$0xff]
        %v309 = vld [vmem:[%s302 + $0x20] sm:$0xff]
        %v310 = vld [vmem:[%s302 + $0x28] sm:$0xff]
        %v311 = vld [vmem:[%s302 + $0x30] sm:$0xff]
        %v312 = vld [vmem:[%s302 + $0x38] sm:$0xff]
        %v313 = vld [vmem:[%s302 + $0x40] sm:$0xff]
        %v314 = vld [vmem:[%s302 + $0x48] sm:$0xff]
        %v315 = vld [vmem:[%s2] sm:$0xff]
        %v316 = vld [vmem:[%s2 + $0x8] sm:$0xff]
        %318 = vset.pattern.permute.xlu0 0
        %319 = vperm.xlu0 %318, %v315
        %v320 = vpop.permute.xlu0 %319
        %323 = vset.pattern.permute.xlu0 0
        %324 = vperm.xlu0 %323, %v316
        %v325 = vpop.permute.xlu0 %324
        %vm327 = vcmask 326656
        %v329 = vsel %vm327, %v303, 0
        %v332 = vsel %vm327, %v304, 0
        %334 = vmatpush.msra.mxu0 0.0
        %335 = vmatpush.msra.mxu0 0.0
        %336 = vmatpush.msra.mxu0 0.0
        %337 = vmatpush.msra.mxu0 0.0
        %338 = vmatpush.msra.mxu0 0.0
        %339 = vmatpush.msra.mxu0 0.0
        %340 = vmatpush.msra.mxu0 0.0
        %341 = vmatpush.msra.mxu0 0.0
        %342 = vmatpush.msra.mxu0 0.0
        %343 = vmatpush.msra.mxu0 0.0
        %344 = vmatpush.msra.mxu0 0.0
        %345 = vmatpush.msra.mxu0 %v313
        %346 = vmatpush.msra.mxu0 %v311
        %347 = vmatpush.msra.mxu0 %v309
        %348 = vmatpush.msra.mxu0 %v307
        %349 = vmatpush.msra.mxu0 %v305
        %350 = vmatmul.f32.gmra.mxu0 %v329
        %v351 = vpop.f32.mrf.mxu0
        %v352 = vadd.f32 %v320, %v351
        %353 = vmatmul.f32.gmra.mxu0 %v332
        %v354 = vpop.f32.mrf.mxu0
        %v355 = vadd.f32 %v325, %v354
        %356 = vdwg.mxu0
        %357 = vmatpush.msra.mxu0 0.0
        %358 = vmatpush.msra.mxu0 0.0
        %359 = vmatpush.msra.mxu0 0.0
        %360 = vmatpush.msra.mxu0 0.0
        %361 = vmatpush.msra.mxu0 0.0
        %362 = vmatpush.msra.mxu0 0.0
        %363 = vmatpush.msra.mxu0 0.0
        %364 = vmatpush.msra.mxu0 0.0
        %365 = vmatpush.msra.mxu0 0.0
        %366 = vmatpush.msra.mxu0 0.0
        %367 = vmatpush.msra.mxu0 0.0
        %368 = vmatpush.msra.mxu0 %v314
        %369 = vmatpush.msra.mxu0 %v312
        %370 = vmatpush.msra.mxu0 %v310
        %371 = vmatpush.msra.mxu0 %v308
        %372 = vmatpush.msra.mxu0 %v306
        %373 = vmatmul.f32.gmra.mxu0 %v329
        %v374 = vpop.f32.mrf.mxu0
        %v375 = vadd.f32 %v320, %v374
        %376 = vmatmul.f32.gmra.mxu0 %v332
        %v377 = vpop.f32.mrf.mxu0
        %v378 = vadd.f32 %v325, %v377
        %379 = vdwg.mxu0
        %v380 = vmax.f32 %v352, 0.0
        %v381 = vmax.f32 %v375, 0.0
        %v382 = vmax.f32 %v355, 0.0
        %v383 = vmax.f32 %v378, 0.0
        %v384 = vld [vmem:[%s3] sm:$0xff]
        %v385 = vld [vmem:[%s3 + $0x8] sm:$0xff]
        %v386 = vld [vmem:[%s3 + $0x10] sm:$0xff]
        %v387 = vld [vmem:[%s3 + $0x18] sm:$0xff]
        %v388 = vld [vmem:[%s3 + $0x20] sm:$0xff]
        %v389 = vld [vmem:[%s3 + $0x28] sm:$0xff]
        %v390 = vld [vmem:[%s3 + $0x30] sm:$0xff]
        %v391 = vld [vmem:[%s3 + $0x38] sm:$0xff]
        %v392 = vld [vmem:[%s3 + $0x40] sm:$0xff]
        %v393 = vld [vmem:[%s3 + $0x48] sm:$0xff]
        %v394 = vld [vmem:[%s3 + $0x50] sm:$0xff]
        %v395 = vld [vmem:[%s3 + $0x58] sm:$0xff]
        %v396 = vld [vmem:[%s3 + $0x60] sm:$0xff]
        %v397 = vld [vmem:[%s3 + $0x68] sm:$0xff]
        %v398 = vld [vmem:[%s3 + $0x70] sm:$0xff]
        %v399 = vld [vmem:[%s3 + $0x78] sm:$0xff]
        %v400 = vld [vmem:[%s3 + $0x80] sm:$0xff]
        %v401 = vld [vmem:[%s3 + $0x88] sm:$0xff]
        %v402 = vld [vmem:[%s3 + $0x90] sm:$0xff]
        %v403 = vld [vmem:[%s3 + $0x98] sm:$0xff]
        %v404 = vld [vmem:[%s3 + $0xa0] sm:$0xff]
        %v405 = vld [vmem:[%s3 + $0xa8] sm:$0xff]
        %v406 = vld [vmem:[%s3 + $0xb0] sm:$0xff]
        %v407 = vld [vmem:[%s3 + $0xb8] sm:$0xff]
        %v408 = vld [vmem:[%s3 + $0xc0] sm:$0xff]
        %v409 = vld [vmem:[%s3 + $0xc8] sm:$0xff]
        %v410 = vld [vmem:[%s3 + $0xd0] sm:$0xff]
        %v411 = vld [vmem:[%s3 + $0xd8] sm:$0xff]
        %v412 = vld [vmem:[%s3 + $0xe0] sm:$0xff]
        %v413 = vld [vmem:[%s3 + $0xe8] sm:$0xff]
        %v414 = vld [vmem:[%s3 + $0xf0] sm:$0xff]
        %v415 = vld [vmem:[%s3 + $0xf8] sm:$0xff]
        %v416 = vld [vmem:[%s3 + $0x100] sm:$0xff]
        %v417 = vld [vmem:[%s3 + $0x108] sm:$0xff]
        %v418 = vld [vmem:[%s3 + $0x110] sm:$0xff]
        %v419 = vld [vmem:[%s3 + $0x118] sm:$0xff]
        %v420 = vld [vmem:[%s3 + $0x120] sm:$0xff]
        %v421 = vld [vmem:[%s3 + $0x128] sm:$0xff]
        %v422 = vld [vmem:[%s3 + $0x130] sm:$0xff]
        %v423 = vld [vmem:[%s3 + $0x138] sm:$0xff]
        %v424 = vld [vmem:[%s3 + $0x140] sm:$0xff]
        %v425 = vld [vmem:[%s3 + $0x148] sm:$0xff]
        %v426 = vld [vmem:[%s3 + $0x150] sm:$0xff]
        %v427 = vld [vmem:[%s3 + $0x158] sm:$0xff]
        %v428 = vld [vmem:[%s3 + $0x160] sm:$0xff]
        %v429 = vld [vmem:[%s3 + $0x168] sm:$0xff]
        %v430 = vld [vmem:[%s3 + $0x170] sm:$0xff]
        %v431 = vld [vmem:[%s3 + $0x178] sm:$0xff]
        %v432 = vld [vmem:[%s3 + $0x180] sm:$0xff]
        %v433 = vld [vmem:[%s3 + $0x188] sm:$0xff]
        %v434 = vld [vmem:[%s3 + $0x190] sm:$0xff]
        %v435 = vld [vmem:[%s3 + $0x198] sm:$0xff]
        %v436 = vld [vmem:[%s3 + $0x1a0] sm:$0xff]
        %v437 = vld [vmem:[%s3 + $0x1a8] sm:$0xff]
        %v438 = vld [vmem:[%s3 + $0x1b0] sm:$0xff]
        %v439 = vld [vmem:[%s3 + $0x1b8] sm:$0xff]
        %v440 = vld [vmem:[%s3 + $0x1c0] sm:$0xff]
        %v441 = vld [vmem:[%s3 + $0x1c8] sm:$0xff]
        %v442 = vld [vmem:[%s3 + $0x1d0] sm:$0xff]
        %v443 = vld [vmem:[%s3 + $0x1d8] sm:$0xff]
        %v444 = vld [vmem:[%s3 + $0x1e0] sm:$0xff]
        %v445 = vld [vmem:[%s3 + $0x1e8] sm:$0xff]
        %v446 = vld [vmem:[%s3 + $0x1f0] sm:$0xff]
        %v447 = vld [vmem:[%s3 + $0x1f8] sm:$0xff]
        %448 = vmatpush.msra.mxu0 %v414
        %449 = vmatpush.msra.mxu0 %v412
        %450 = vmatpush.msra.mxu0 %v410
        %451 = vmatpush.msra.mxu0 %v408
        %452 = vmatpush.msra.mxu0 %v406
        %453 = vmatpush.msra.mxu0 %v404
        %454 = vmatpush.msra.mxu0 %v402
        %455 = vmatpush.msra.mxu0 %v400
        %456 = vmatpush.msra.mxu0 %v398
        %457 = vmatpush.msra.mxu0 %v396
        %458 = vmatpush.msra.mxu0 %v394
        %459 = vmatpush.msra.mxu0 %v392
        %460 = vmatpush.msra.mxu0 %v390
        %461 = vmatpush.msra.mxu0 %v388
        %462 = vmatpush.msra.mxu0 %v386
        %463 = vmatpush.msra.mxu0 %v384
        %464 = vmatmul.f32.gmra.mxu0 %v380
        %v465 = vpop.f32.mrf.mxu0
        %v466 = vadd.f32 0.0, %v465
        %467 = vmatmul.f32.gmra.mxu0 %v382
        %v468 = vpop.f32.mrf.mxu0
        %v469 = vadd.f32 0.0, %v468
        %470 = vdwg.mxu0
        %471 = vmatpush.msra.mxu0 %v446
        %472 = vmatpush.msra.mxu0 %v444
        %473 = vmatpush.msra.mxu0 %v442
        %474 = vmatpush.msra.mxu0 %v440
        %475 = vmatpush.msra.mxu0 %v438
        %476 = vmatpush.msra.mxu0 %v436
        %477 = vmatpush.msra.mxu0 %v434
        %478 = vmatpush.msra.mxu0 %v432
        %479 = vmatpush.msra.mxu0 %v430
        %480 = vmatpush.msra.mxu0 %v428
        %481 = vmatpush.msra.mxu0 %v426
        %482 = vmatpush.msra.mxu0 %v424
        %483 = vmatpush.msra.mxu0 %v422
        %484 = vmatpush.msra.mxu0 %v420
        %485 = vmatpush.msra.mxu0 %v418
        %486 = vmatpush.msra.mxu0 %v416
        %487 = vmatmul.f32.gmra.mxu0 %v381
        %v488 = vpop.f32.mrf.mxu0
        %v489 = vadd.f32 %v466, %v488
        %490 = vmatmul.f32.gmra.mxu0 %v383
        %v491 = vpop.f32.mrf.mxu0
        %v492 = vadd.f32 %v469, %v491
        %493 = vdwg.mxu0
        %494 = vmatpush.msra.mxu0 %v415
        %495 = vmatpush.msra.mxu0 %v413
        %496 = vmatpush.msra.mxu0 %v411
        %497 = vmatpush.msra.mxu0 %v409
        %498 = vmatpush.msra.mxu0 %v407
        %499 = vmatpush.msra.mxu0 %v405
        %500 = vmatpush.msra.mxu0 %v403
        %501 = vmatpush.msra.mxu0 %v401
        %502 = vmatpush.msra.mxu0 %v399
        %503 = vmatpush.msra.mxu0 %v397
        %504 = vmatpush.msra.mxu0 %v395
        %505 = vmatpush.msra.mxu0 %v393
        %506 = vmatpush.msra.mxu0 %v391
        %507 = vmatpush.msra.mxu0 %v389
        %508 = vmatpush.msra.mxu0 %v387
        %509 = vmatpush.msra.mxu0 %v385
        %510 = vmatmul.f32.gmra.mxu0 %v380
        %v511 = vpop.f32.mrf.mxu0
        %v512 = vadd.f32 0.0, %v511
        %513 = vmatmul.f32.gmra.mxu0 %v382
        %v514 = vpop.f32.mrf.mxu0
        %v515 = vadd.f32 0.0, %v514
        %516 = vdwg.mxu0
        %517 = vmatpush.msra.mxu0 %v447
        %518 = vmatpush.msra.mxu0 %v445
        %519 = vmatpush.msra.mxu0 %v443
        %520 = vmatpush.msra.mxu0 %v441
        %521 = vmatpush.msra.mxu0 %v439
        %522 = vmatpush.msra.mxu0 %v437
        %523 = vmatpush.msra.mxu0 %v435
        %524 = vmatpush.msra.mxu0 %v433
        %525 = vmatpush.msra.mxu0 %v431
        %526 = vmatpush.msra.mxu0 %v429
        %527 = vmatpush.msra.mxu0 %v427
        %528 = vmatpush.msra.mxu0 %v425
        %529 = vmatpush.msra.mxu0 %v423
        %530 = vmatpush.msra.mxu0 %v421
        %531 = vmatpush.msra.mxu0 %v419
        %532 = vmatpush.msra.mxu0 %v417
        %533 = vmatmul.f32.gmra.mxu0 %v381
        %v534 = vpop.f32.mrf.mxu0
        %v535 = vadd.f32 %v512, %v534
        %536 = vmatmul.f32.gmra.mxu0 %v383
        %v537 = vpop.f32.mrf.mxu0
        %v538 = vadd.f32 %v515, %v537
        %539 = vdwg.mxu0
        %vm540 = vcmask 203776
        %541 = vst.msk [vmem:[#allocation2] sm:$0xff] %vm540, %v489
        %542 = vst.msk [vmem:[#allocation2 + $0x8] sm:$0xff] %vm540, %v492
        %545 = vrot.lane.b32.xlu0 %v489, 103
        %v546 = vpop.permute.xlu0 %545
        %547 = vrot.lane.b32.xlu0 %v492, 103
        %v548 = vpop.permute.xlu0 %547
        %551 = vst.msk [vmem:[#allocation2 + $0x10] sm:$0xff] %vm540, %v546
        %552 = vst.msk [vmem:[#allocation2 + $0x18] sm:$0xff] %vm540, %v548
        %553 = vrot.lane.b32.xlu0 %v489, 78
        %v554 = vpop.permute.xlu0 %553
        %555 = vrot.lane.b32.xlu0 %v492, 78
        %v556 = vpop.permute.xlu0 %555
        %559 = vst.msk [vmem:[#allocation2 + $0x20] sm:$0xff] %vm540, %v554
        %560 = vst.msk [vmem:[#allocation2 + $0x28] sm:$0xff] %vm540, %v556
        %561 = vrot.lane.b32.xlu0 %v489, 53
        %v562 = vpop.permute.xlu0 %561
        %563 = vrot.lane.b32.xlu0 %v492, 53
        %v564 = vpop.permute.xlu0 %563
        %567 = vst.msk [vmem:[#allocation2 + $0x30] sm:$0xff] %vm540, %v562
        %568 = vst.msk [vmem:[#allocation2 + $0x38] sm:$0xff] %vm540, %v564
        %569 = vrot.lane.b32.xlu0 %v489, 28
        %v570 = vpop.permute.xlu0 %569
        %571 = vrot.lane.b32.xlu0 %v492, 28
        %v572 = vpop.permute.xlu0 %571
        %575 = vst.msk [vmem:[#allocation2 + $0x40] sm:$0xff] %vm540, %v570
        %576 = vst.msk [vmem:[#allocation2 + $0x48] sm:$0xff] %vm540, %v572
        %579 = vrot.lane.b32.xlu0 %v489, 3
        %v580 = vpop.permute.xlu0 %579
        %581 = vrot.lane.b32.xlu0 %v535, 3
        %v582 = vpop.permute.xlu0 %581
        %583 = vrot.lane.b32.xlu0 %v492, 3
        %v584 = vpop.permute.xlu0 %583
        %585 = vrot.lane.b32.xlu0 %v538, 3
        %v586 = vpop.permute.xlu0 %585
        %vm587 = vcmask 23552
        %v588 = vsel %vm587, %v580, %v582
        %v589 = vsel %vm587, %v584, %v586
        %592 = vst.msk [vmem:[#allocation2 + $0x50] sm:$0xff] %vm540, %v588
        %593 = vst.msk [vmem:[#allocation2 + $0x58] sm:$0xff] %vm540, %v589
        %594 = vrot.lane.b32.xlu0 %v535, 106
        %v595 = vpop.permute.xlu0 %594
        %596 = vrot.lane.b32.xlu0 %v538, 106
        %v597 = vpop.permute.xlu0 %596
        %600 = vst.msk [vmem:[#allocation2 + $0x60] sm:$0xff] %vm540, %v595
        %601 = vst.msk [vmem:[#allocation2 + $0x68] sm:$0xff] %vm540, %v597
        %602 = vrot.lane.b32.xlu0 %v535, 81
        %v603 = vpop.permute.xlu0 %602
        %604 = vrot.lane.b32.xlu0 %v538, 81
        %v605 = vpop.permute.xlu0 %604
        %608 = vst.msk [vmem:[#allocation2 + $0x70] sm:$0xff] %vm540, %v603
        %609 = vst.msk [vmem:[#allocation2 + $0x78] sm:$0xff] %vm540, %v605
        %610 = vrot.lane.b32.xlu0 %v535, 56
        %v611 = vpop.permute.xlu0 %610
        %612 = vrot.lane.b32.xlu0 %v538, 56
        %v613 = vpop.permute.xlu0 %612
        %616 = vst.msk [vmem:[#allocation2 + $0x80] sm:$0xff] %vm540, %v611
        %617 = vst.msk [vmem:[#allocation2 + $0x88] sm:$0xff] %vm540, %v613
        %v618 = vld [vmem:[%s4] sm:$0xff]
        %v619 = vld [vmem:[%s4 + $0x8] sm:$0xff]
        %v620 = vld [vmem:[%s4 + $0x10] sm:$0xff]
        %v621 = vld [vmem:[%s4 + $0x18] sm:$0xff]
        %v622 = vld [vmem:[#allocation2] sm:$0xff]
        %v623 = vld [vmem:[#allocation2 + $0x8] sm:$0xff]
        %v624 = vld [vmem:[#allocation2 + $0x10] sm:$0xff]
        %v625 = vld [vmem:[#allocation2 + $0x18] sm:$0xff]
        %v626 = vld [vmem:[#allocation2 + $0x20] sm:$0xff]
        %v627 = vld [vmem:[#allocation2 + $0x28] sm:$0xff]
        %v628 = vld [vmem:[#allocation2 + $0x30] sm:$0xff]
        %v629 = vld [vmem:[#allocation2 + $0x38] sm:$0xff]
        %v630 = vld [vmem:[#allocation2 + $0x40] sm:$0xff]
        %v631 = vld [vmem:[#allocation2 + $0x48] sm:$0xff]
        %v632 = vld [vmem:[#allocation2 + $0x50] sm:$0xff]
        %v633 = vld [vmem:[#allocation2 + $0x58] sm:$0xff]
        %v634 = vld [vmem:[#allocation2 + $0x60] sm:$0xff]
        %v635 = vld [vmem:[#allocation2 + $0x68] sm:$0xff]
        %v636 = vld [vmem:[#allocation2 + $0x70] sm:$0xff]
        %v637 = vld [vmem:[#allocation2 + $0x78] sm:$0xff]
        %v638 = vld [vmem:[#allocation2 + $0x80] sm:$0xff]
        %v639 = vld [vmem:[#allocation2 + $0x88] sm:$0xff]
        %v640 = vld [vmem:[%s5] sm:$0xff]
        %v641 = vld [vmem:[%s5 + $0x8] sm:$0xff]
        %643 = vset.pattern.permute.xlu0 0
        %644 = vperm.xlu0 %643, %v640
        %v645 = vpop.permute.xlu0 %644
        %648 = vset.pattern.permute.xlu0 0
        %649 = vperm.xlu0 %648, %v641
        %v650 = vpop.permute.xlu0 %649
        %vm652 = vcmask 130048
        %v654 = vsel %vm652, %v619, 0
        %v657 = vsel %vm652, %v621, 0
        %659 = vmatpush.msra.mxu0 %v637
        %660 = vmatpush.msra.mxu0 %v636
        %661 = vmatpush.msra.mxu0 %v635
        %662 = vmatpush.msra.mxu0 %v634
        %663 = vmatpush.msra.mxu0 %v633
        %664 = vmatpush.msra.mxu0 %v632
        %665 = vmatpush.msra.mxu0 %v631
        %666 = vmatpush.msra.mxu0 %v630
        %667 = vmatpush.msra.mxu0 %v629
        %668 = vmatpush.msra.mxu0 %v628
        %669 = vmatpush.msra.mxu0 %v627
        %670 = vmatpush.msra.mxu0 %v626
        %671 = vmatpush.msra.mxu0 %v625
        %672 = vmatpush.msra.mxu0 %v624
        %673 = vmatpush.msra.mxu0 %v623
        %674 = vmatpush.msra.mxu0 %v622
        %675 = vmatmul.f32.gmra.mxu0 %v618
        %v676 = vpop.f32.mrf.mxu0
        %v677 = vadd.f32 %v645, %v676
        %678 = vmatmul.f32.gmra.mxu0 %v620
        %v679 = vpop.f32.mrf.mxu0
        %v680 = vadd.f32 %v650, %v679
        %681 = vdwg.mxu0
        %682 = vmatpush.msra.mxu0 0.0
        %683 = vmatpush.msra.mxu0 0.0
        %684 = vmatpush.msra.mxu0 0.0
        %685 = vmatpush.msra.mxu0 0.0
        %686 = vmatpush.msra.mxu0 0.0
        %687 = vmatpush.msra.mxu0 0.0
        %688 = vmatpush.msra.mxu0 0.0
        %689 = vmatpush.msra.mxu0 0.0
        %690 = vmatpush.msra.mxu0 0.0
        %691 = vmatpush.msra.mxu0 0.0
        %692 = vmatpush.msra.mxu0 0.0
        %693 = vmatpush.msra.mxu0 0.0
        %694 = vmatpush.msra.mxu0 0.0
        %695 = vmatpush.msra.mxu0 0.0
        %696 = vmatpush.msra.mxu0 %v639
        %697 = vmatpush.msra.mxu0 %v638
        %698 = vmatmul.f32.gmra.mxu0 %v654
        %v699 = vpop.f32.mrf.mxu0
        %v700 = vadd.f32 %v677, %v699
        %701 = vmatmul.f32.gmra.mxu0 %v657
        %v702 = vpop.f32.mrf.mxu0
        %v703 = vadd.f32 %v680, %v702
        %704 = vdwg.mxu0
        %v705 = vmax.f32 %v700, 0.0
        %v706 = vmax.f32 %v703, 0.0
        %v708 = vsel %vm652, 0.0625, 0
        %710 = vmatpush.msra.mxu0 0.0
        %711 = vmatpush.msra.mxu0 0.0
        %712 = vmatpush.msra.mxu0 0.0
        %713 = vmatpush.msra.mxu0 0.0
        %714 = vmatpush.msra.mxu0 0.0
        %715 = vmatpush.msra.mxu0 0.0
        %716 = vmatpush.msra.mxu0 0.0
        %717 = vmatpush.msra.mxu0 0.0
        %718 = vmatpush.msra.mxu0 0.0
        %719 = vmatpush.msra.mxu0 0.0
        %720 = vmatpush.msra.mxu0 0.0
        %721 = vmatpush.msra.mxu0 0.0
        %722 = vmatpush.msra.mxu0 0.0
        %723 = vmatpush.msra.mxu0 0.0
        %724 = vmatpush.msra.mxu0 %v706
        %725 = vmatpush.msra.mxu0 %v705
        %726 = vmatmul.f32.gmra.mxu0 %v708
        %v727 = vpop.f32.mrf.mxu0
        %v728 = vadd.f32 0.0, %v727
        %729 = vdwg.mxu0
        %v730 = vld [vmem:[%s6] sm:$0xff]
        %v731 = vld [vmem:[%s6 + $0x8] sm:$0xff]
        %v732 = vld [vmem:[%s6 + $0x10] sm:$0xff]
        %v733 = vld [vmem:[%s6 + $0x18] sm:$0x1]
        %v734 = vld [vmem:[%s7] sm:$0x1]
        %v736 = vsel %vm540, %v728, 0
        %vm738 = vcmask 1040384
        %v740 = vsel %vm738, %v733, 0
        %742 = vmatpush.msra.mxu0 0.0
        %743 = vmatpush.msra.mxu0 0.0
        %744 = vmatpush.msra.mxu0 0.0
        %745 = vmatpush.msra.mxu0 0.0
        %746 = vmatpush.msra.mxu0 0.0
        %747 = vmatpush.msra.mxu0 0.0
        %748 = vmatpush.msra.mxu0 0.0
        %749 = vmatpush.msra.mxu0 0.0
        %750 = vmatpush.msra.mxu0 0.0
        %751 = vmatpush.msra.mxu0 0.0
        %752 = vmatpush.msra.mxu0 0.0
        %753 = vmatpush.msra.mxu0 0.0
        %754 = vmatpush.msra.mxu0 %v740
        %755 = vmatpush.msra.mxu0 %v732
        %756 = vmatpush.msra.mxu0 %v731
        %757 = vmatpush.msra.mxu0 %v730
        %758 = vmatmul.f32.gmra.mxu0 %v736
        %v759 = vpop.f32.mrf.mxu0
        %v760 = vadd.f32 %v734, %v759
        %761 = vdwg.mxu0
        %vm762 = vcmask 16384
        %763 = vst.msk [vmem:[%s297] sm:$0x1] %vm762, %v760
        %s764 = sand.u32 %s203, 1
        %s765 = scalar_lea.sflag [#allocation4], %s764
        %s766 = sand.u32 %s203, 1
        %s767 = scalar_lea.vmem [#allocation3], %s766
        // Predicated region
        $region53: #{tpu_custom_call.1} parent=51 // pred_check
          %p768 = pneg %p213
        $region54: #{tpu_custom_call.1} parent=51 // pred_check_branch
          %770 = sbr.rel (%p768) target = $region56
        $region55: #{tpu_custom_call.1} parent=51 // pred_region
          %772 = vsyncadd %s765, 0
          %s773 = scalar_lea.hbm %s8, %s22
          %s775 = sshll.u32 %s767, 4
          %s776 = int_to_ptr.vmem [resolvable:$true] %s775
          %s777 = sshll.u32 %s773, 4
          %s778 = int_to_ptr.hbm [resolvable:$true] %s777
          %780 = dma.vmem_to_hbm [thread:$0]  %s776, 16, %s778, %s765
        $region56: #{tpu_custom_call.1} parent=51 // pred_fallthru
          _
      $region52: #{tpu_custom_call.1} parent=5 // pred_fallthru
        _
      %p781 = scmp.le.s32.totalorder 2, %s17
      // Predicated region
      $region57: #{tpu_custom_call.1} parent=5 // pred_check
        %p782 = pneg %p781
      $region58: #{tpu_custom_call.1} parent=5 // pred_check_branch
        %784 = sbr.rel (%p782) target = $region60
      $region59: #{tpu_custom_call.1} parent=5 // pred_region
        %s785 = ssub.s32 %s17, 2
        // Predicated region
        $region61: #{tpu_custom_call.1} parent=59 // pred_check
          %p786 = pneg %p219
        $region62: #{tpu_custom_call.1} parent=59 // pred_check_branch
          %788 = sbr.rel (%p786) target = $region64
        $region63: #{tpu_custom_call.1} parent=59 // pred_region
          %s789 = sand.u32 %s204, 1
          %s790 = scalar_lea.sflag [#allocation4], %s789
          %s791 = sand.u32 %s204, 1
          %s792 = scalar_lea.vmem [#allocation3], %s791
          %794 = dma.done %s790, 16
        $region64: #{tpu_custom_call.1} parent=59 // pred_fallthru
          _
      $region60: #{tpu_custom_call.1} parent=5 // pred_fallthru
        _
    $region6: #{tpu_custom_call.1} parent=1 // loop_footer
      %s21 = sadd.s32 1, %s17
    $region7: #{tpu_custom_call.1} parent=1 // loop_footer_branch
      %16 = sbr.rel target = $region3
    $region8: #{tpu_custom_call.1} parent=1 // loop_exit
      _
    %795 = vsyncpa [#allocation4], 1
    %s796 = scalar_lea.sflag [#allocation4], 1
    %797 = vsyncpa %s796, 1

</llo_original>
